<compile_context>
chip_gen: v6e
topology: v6e:2x2x1
jax: 0.10.0
libtpu: 0.0.40
codegen_flags: <defaults>
</compile_context>

<pallas_src>
import math

import jax
import jax.numpy as jnp
from jax.experimental import pallas as pl
from jax.experimental.pallas import tpu as pltpu


def _scale_add_kernel(x_ref, o_ref):
    x = x_ref[...]
    two = jnp.asarray(2, dtype=x.dtype)
    one = jnp.asarray(1, dtype=x.dtype)
    o_ref[...] = x * two + one


_TARGET_BLOCK_BYTES = 4 * 1024 * 1024     # per pipeline buffer
_MIN_SPLIT_BYTES = 1 * 1024 * 1024        # force >=2 grid steps above this (v7x: 2 TCs)
_VMEM_LIMIT_BYTES = 48 * 1024 * 1024      # < 64 MiB physical (v7x), > v5e's 16 MiB default
_LANE_CANDIDATES = (2048, 1024, 512, 256, 128)


def _call(kernel_input, block_shape, grid):
    ndim = len(block_shape)
    index_map = (lambda i: (i, 0)) if ndim == 2 else (lambda i: (i,))
    return pl.pallas_call(
        _scale_add_kernel,
        out_shape=jax.ShapeDtypeStruct(kernel_input.shape, kernel_input.dtype),
        grid_spec=pltpu.PrefetchScalarGridSpec(
            num_scalar_prefetch=0,
            grid=grid,
            in_specs=[pl.BlockSpec(block_shape, index_map)],
            out_specs=pl.BlockSpec(block_shape, index_map),
        ),
        compiler_params=pltpu.CompilerParams(
            dimension_semantics=("parallel",),
            vmem_limit_bytes=_VMEM_LIMIT_BYTES,
        ),
    )(kernel_input)


def pt_module_forward(x):
    """Equivalent of PtModule.forward: returns x * 2 + 1 (same shape/dtype)."""
    orig_shape = x.shape
    total = int(math.prod(orig_shape)) if orig_shape else 1
    if total == 0:
        return x  # nothing to compute
    itemsize = jnp.dtype(x.dtype).itemsize
    total_bytes = total * itemsize

    # Widest lane-dense last dim that divides the element count (free reshape).
    lane = None
    for cand in _LANE_CANDIDATES:
        if total % cand == 0:
            lane = cand
            break

    if lane is not None:
        # ---- lane-dense 2D path: cdiv grid over rows, masked partial tail ----
        rows = total // lane
        x2d = x.reshape(rows, lane)
        row_bytes = lane * itemsize

        block_rows = max(8, _TARGET_BLOCK_BYTES // row_bytes)
        # Ensure medium/large inputs see >= 2 grid steps so v7x's 2 TCs both stream.
        if total_bytes >= _MIN_SPLIT_BYTES and rows >= 16:
            half_rows = ((-(-rows // 2)) + 7) // 8 * 8  # ceil(rows/2) rounded up to x8
            if half_rows < rows:
                block_rows = min(block_rows, half_rows)
        block_rows = min(block_rows, rows)
        if block_rows != rows:
            # Partial blocks require the block dim itself to be a multiple of 8.
            block_rows = max(8, (block_rows // 8) * 8)

        grid = (pl.cdiv(rows, block_rows),)
        out2d = _call(x2d, (block_rows, lane), grid)
        return out2d.reshape(orig_shape)

    # ---- ragged fallback (total % 128 != 0): 1D cdiv grid, masked tail block ----
    flat = x.reshape(total)
    block_elems = max(1024, (_TARGET_BLOCK_BYTES // itemsize) // 1024 * 1024)
    if total <= block_elems:
        block_elems = total  # single block equal to full array dims (exception to x128 rule)
        grid = (1,)
    else:
        grid = (pl.cdiv(total, block_elems),)
    out_flat = _call(flat, (block_elems,), grid)
    return out_flat.reshape(orig_shape)


if __name__ == "__main__":
    key = jax.random.PRNGKey(0)
    x = jax.random.normal(key, (2, 4, 16, 16), dtype=jnp.float32)

    y = pt_module_forward(x)
    jax.block_until_ready(y)

    # correctness check against pure-JAX reference
    y_ref = x * 2 + 1
    assert y.shape == x.shape and y.dtype == x.dtype
    assert jnp.allclose(y, y_ref, atol=1e-6), "mismatch vs reference"

    print("KERNEL_OK")
</pallas_src>

<mosaic_0001>
module attributes {stable_mosaic.version = 11 : i64} {
  func.func @_scale_add_kernel(%arg0: i32, %arg1: memref<1x2048xf32, #tpu.memory_space<vmem>>, %arg2: memref<1x2048xf32, #tpu.memory_space<vmem>>) attributes {dimension_semantics = [#tpu.dimension_semantics<parallel>], iteration_bounds = array<i64: 1>, scalar_prefetch = 0 : i64, scratch_operands = 0 : i64, tpu.core_type = #tpu.core_type<tc>, window_params = [{transform_indices = @transform_0, window_bounds = array<i64: 1, 2048>}, {transform_indices = @transform_1, window_bounds = array<i64: 1, 2048>}]} {
    %c0 = arith.constant 0 : index
    %c0_0 = arith.constant 0 : index
    %0 = vector.load %arg1[%c0, %c0_0] : memref<1x2048xf32, #tpu.memory_space<vmem>>, vector<1x2048xf32>
    %cst = arith.constant 2.000000e+00 : f32
    %1 = vector.broadcast %cst : f32 to vector<1x2048xf32>
    %2 = arith.mulf %0, %1 : vector<1x2048xf32>
    %cst_1 = arith.constant 1.000000e+00 : f32
    %3 = vector.broadcast %cst_1 : f32 to vector<1x2048xf32>
    %4 = arith.addf %2, %3 : vector<1x2048xf32>
    %c0_2 = arith.constant 0 : index
    %c0_3 = arith.constant 0 : index
    %5 = vector.load %arg2[%c0_2, %c0_3] : memref<1x2048xf32, #tpu.memory_space<vmem>>, vector<1x2048xf32>
    tpu.vector_store %arg2[%c0_2, %c0_3], %4 {strides = array<i32>} : memref<1x2048xf32, #tpu.memory_space<vmem>>, vector<1x2048xf32>,
    return
  }
  func.func @transform_0(%arg0: i32) -> (i32, i32) {
    %c0_i32 = arith.constant 0 : i32
    %c0_i32_0 = arith.constant 0 : i32
    return %arg0, %c0_i32 : i32, i32
  }
  func.func @transform_1(%arg0: i32) -> (i32, i32) {
    %c0_i32 = arith.constant 0 : i32
    %c0_i32_0 = arith.constant 0 : i32
    return %arg0, %c0_i32 : i32, i32
  }
}

</mosaic_0001>

<llo_original>
// kernel: tpu_custom_call.1
$region0: #{tpu_custom_call.1}
  #allocation0 [shape = 'u32[]', space=smem, size = 0x4, offset = 0x4, fixed_abs, tag = 'smem constant byte address 0x4 - core index']
  #allocation1 [shape = 'u32[144,128]{1,0:T(1,128)}', space=vmem, size = 0x12000, scoped, tag = 'internal scratch']
  %s0 = inlined_call_operand.hbm [shape: f32[1,2048], index: 0, kind: input, shape index: {}]
  %s1 = inlined_call_operand.hbm [shape: f32[1,2048], index: 1, kind: output, shape index: {}]
  %s2 = sld [smem:[#allocation0]]
  $region18: #{tpu_custom_call.1} parent=0
    _
  %s4 = ssub.s32 1, %s2
  %s5 = scalar_select 0, %s4, %s2
  $region1: #{tpu_custom_call.1} parent=0
    #allocation2 [shape = 'u8[8192]{0}', space=vmem, size = 0x2000, scoped, tag = 'input window, operand 0, single buffered']
    #allocation3 [shape = 's32[1]{0}', space=sflag, size = 0x4, scoped, tag = 'scoped memory for tpu_custom_call.1']
    #allocation4 [shape = 's32[1]{0}', space=sflag, size = 0x4, scoped, tag = 'scoped memory for tpu_custom_call.1']
    #allocation5 [shape = 'u8[8192]{0}', space=vmem, size = 0x2000, scoped, tag = 'output window, operand 0, single buffered']
    %6 = vsyncpa [#allocation3], 0
    %7 = vsyncpa [#allocation4], 0
    // Predicated region
    $region2: #{tpu_custom_call.1} parent=1 // pred_check
      _
    $region3: #{tpu_custom_call.1} parent=1 // pred_check_branch
      %9 = sbr.rel (0) target = $region5
    $region4: #{tpu_custom_call.1} parent=1 // pred_region
      %s11 = ssub.s32 256, 256
      %12 = vsyncadd [#allocation3], %s11
      %s14 = sshll.u32 [#allocation2], 4
      %s15 = int_to_ptr.vmem [resolvable:$true] %s14
      %17 = dma.hbm_to_vmem [thread:$0]  %s0, 256, %s15, [#allocation3]
    $region5: #{tpu_custom_call.1} parent=1 // pred_fallthru
      _
    // Predicated region
    $region6: #{tpu_custom_call.1} parent=1 // pred_check
      _
    $region7: #{tpu_custom_call.1} parent=1 // pred_check_branch
      %19 = sbr.rel (0) target = $region9
    $region8: #{tpu_custom_call.1} parent=1 // pred_region
      %20 = dma.done [#allocation3], 256
    $region9: #{tpu_custom_call.1} parent=1 // pred_fallthru
      _
    %v21 = vld [vmem:[#allocation2] sm:$0xff]
    %v22 = vld [vmem:[#allocation2 + $0x8] sm:$0xff]
    %v23 = vmul.f32 %v21, 2.0
    %v24 = vmul.f32 %v22, 2.0
    %v25 = vadd.f32 %v23, 1.0
    %v26 = vadd.f32 %v24, 1.0
    %27 = vst [vmem:[#allocation5] sm:$0xff] %v25
    %28 = vst [vmem:[#allocation5 + $0x8] sm:$0xff] %v26
    // Predicated region
    $region10: #{tpu_custom_call.1} parent=1 // pred_check
      _
    $region11: #{tpu_custom_call.1} parent=1 // pred_check_branch
      %30 = sbr.rel (0) target = $region13
    $region12: #{tpu_custom_call.1} parent=1 // pred_region
      %s32 = ssub.s32 256, 256
      %33 = vsyncadd [#allocation4], %s32
      %s35 = sshll.u32 [#allocation5], 4
      %s36 = int_to_ptr.vmem [resolvable:$true] %s35
      %38 = dma.vmem_to_hbm [thread:$0]  %s36, 256, %s1, [#allocation4]
    $region13: #{tpu_custom_call.1} parent=1 // pred_fallthru
      _
    // Predicated region
    $region14: #{tpu_custom_call.1} parent=1 // pred_check
      _
    $region15: #{tpu_custom_call.1} parent=1 // pred_check_branch
      %40 = sbr.rel (0) target = $region17
    $region16: #{tpu_custom_call.1} parent=1 // pred_region
      %41 = dma.done [#allocation4], 256
    $region17: #{tpu_custom_call.1} parent=1 // pred_fallthru
      _
    %42 = vsyncpa [#allocation3], 1
    %43 = vsyncpa [#allocation4], 1

</llo_original>
